<compile_context>
chip_gen: v6e
topology: v6e:2x2x1
jax: 0.10.0
libtpu: 0.0.40
codegen_flags: <defaults>
</compile_context>

<pallas_src>
import jax
import jax.numpy as jnp
from jax import lax
from jax.experimental import pallas as pl
from jax.experimental.pallas import tpu as pltpu


# ----------------------------- kernels --------------------------------------

def _matmul_cast_kernel(a_ref, b_ref, o_ref):
    """o_tile = a_tile @ b (f32 accumulate on the MXU, cast to o dtype)."""
    o_ref[...] = jnp.dot(a_ref[...], b_ref[...],
                         preferred_element_type=jnp.float32).astype(o_ref.dtype)


def _gcn_relu_kernel(adj_ref, xw_ref, h_ref, acc_ref):
    """h_row_tile = relu(sum_k adj[i, k] @ xw[k]) with K-tiled f32 accumulation."""
    k = pl.program_id(1)

    @pl.when(k == 0)
    def _():
        acc_ref[...] = jnp.zeros_like(acc_ref)

    acc_ref[...] += jnp.dot(adj_ref[...], xw_ref[...],
                            preferred_element_type=jnp.float32)

    @pl.when(k == pl.num_programs(1) - 1)
    def _():
        # NOTE: h1_dim < 128 lowers to masked stores; acceptable because this
        # pass is dominated by streaming adj from HBM.
        h_ref[...] = jnp.maximum(acc_ref[...], 0.0).astype(h_ref.dtype)


def _gcn_acc_kernel(adj_ref, g_ref, o_ref):
    """o_row_tile = sum_k adj[i, k] @ g[k]; the f32 output block is the accumulator."""
    @pl.when(pl.program_id(1) == 0)
    def _():
        o_ref[...] = jnp.zeros_like(o_ref)

    o_ref[...] += jnp.dot(adj_ref[...], g_ref[...],
                          preferred_element_type=jnp.float32)


def _decoder_kernel(zi_ref, zj_ref, o_ref):
    """adj_rec[i, j] = z_i @ z_j.T (contract last dims, no transpose materialized)."""
    o_ref[...] = lax.dot_general(
        zi_ref[...], zj_ref[...],
        dimension_numbers=(((1,), (1,)), ((), ())),
        preferred_element_type=jnp.float32).astype(o_ref.dtype)


# ----------------------------- wrapper ---------------------------------------

def _round_up(v, m):
    return -(-v // m) * m


def _pick_divisor(n, candidates):
    """Largest candidate dividing n; n is always a multiple of 128 here."""
    for c in candidates:
        if n % c == 0:
            return c
    return 128


def _pick_row_tile(n_pad, bytes_per_row, budget_bytes,
                   candidates=(1024, 512, 256, 128)):
    """Largest row tile whose double-buffered stream fits in `budget_bytes`."""
    for c in candidates:
        if n_pad % c == 0 and 2 * c * bytes_per_row <= budget_bytes:
            return c
    return 128


def gcn_encoder_forward(x, adj, w1, w2, w3, *, adj_rec_dtype=jnp.bfloat16):
    """Eval-mode GCNEncoder forward: returns (adj_rec, mu, logvar).

    mu / logvar are float32; adj_rec defaults to bfloat16 (HBM-write bound).
    """
    n, f_in = x.shape
    h1_dim = w1.shape[1]
    h2_dim = w2.shape[1]

    bf16 = jnp.bfloat16

    # Pad N to a multiple of 128: zero rows of x and zero rows/cols of adj
    # contribute nothing to any product, so slicing back at the end is exact.
    n_pad = _round_up(n, 128)
    xb = x.astype(bf16)
    adjb = adj.astype(bf16)
    if n_pad != n:
        xb = jnp.pad(xb, ((0, n_pad - n), (0, 0)))
        adjb = jnp.pad(adjb, ((0, n_pad - n), (0, n_pad - n)))
    w1b = w1.astype(bf16)
    w23b = jnp.concatenate([w2, w3], axis=1).astype(bf16)  # [H1, 2*H2]

    # Tile sizes (all >= 128; n_pad is a multiple of 128 so 128 always divides).
    tm = _pick_divisor(n_pad, (256, 128))          # adj row tile
    tk = _pick_divisor(n_pad, (512, 256, 128))     # adj column (reduction) tile
    # Row tile for the feature GEMM: keep the streamed x tile within ~8 MiB.
    tma = _pick_row_tile(n_pad, 2 * (f_in + h1_dim), 8 * 1024 * 1024)
    tmg = _pick_row_tile(n_pad, 2 * (h1_dim + 2 * h2_dim), 8 * 1024 * 1024)
    # Decoder: tall rows x very wide lane-dense columns.
    dec_tm = _pick_divisor(n_pad, (256, 128))
    dec_tn = _pick_divisor(n_pad, (2048, 1024, 512, 256, 128))

    # TODO(synk): for extremely wide features (f_in so large that even a
    # 128-row x tile + resident W1 exceed VMEM) the feature GEMM would also
    # need a K axis over f_in.
    # TODO(synk): consider pipeline_mode=pl.Buffered(1) on the constant-index
    # weight specs and Buffered(3) on the adj stream once validated on-device.

    # --- xw1 = x @ W1 (row-tiled; W1 stays resident, x streams) --------------
    xw1 = pl.pallas_call(
        _matmul_cast_kernel,
        out_shape=jax.ShapeDtypeStruct((n_pad, h1_dim), bf16),
        grid=(n_pad // tma,),
        in_specs=[
            pl.BlockSpec((tma, f_in), lambda i: (i, 0)),
            pl.BlockSpec((f_in, h1_dim), lambda i: (0, 0)),
        ],
        out_specs=pl.BlockSpec((tma, h1_dim), lambda i: (i, 0)),
        compiler_params=pltpu.CompilerParams(dimension_semantics=("parallel",)),
        cost_estimate=pl.CostEstimate(
            flops=2 * n_pad * f_in * h1_dim,
            transcendentals=0,
            bytes_accessed=2 * (n_pad * f_in + f_in * h1_dim + n_pad * h1_dim)),
    )(xb, w1b)

    grid_mk = (n_pad // tm, n_pad // tk)

    # --- h1 = relu(adj @ xw1), row- and K-tiled -------------------------------
    h1 = pl.pallas_call(
        _gcn_relu_kernel,
        out_shape=jax.ShapeDtypeStruct((n_pad, h1_dim), bf16),
        grid=grid_mk,
        in_specs=[
            pl.BlockSpec((tm, tk), lambda i, k: (i, k)),       # adj tile
            pl.BlockSpec((tk, h1_dim), lambda i, k: (k, 0)),   # xw1 K-slice
        ],
        out_specs=pl.BlockSpec((tm, h1_dim), lambda i, k: (i, 0)),
        scratch_shapes=[pltpu.VMEM((tm, h1_dim), jnp.float32)],
        compiler_params=pltpu.CompilerParams(
            dimension_semantics=("parallel", "arbitrary")),
        cost_estimate=pl.CostEstimate(
            flops=2 * n_pad * n_pad * h1_dim,
            transcendentals=0,
            bytes_accessed=2 * n_pad * n_pad + 4 * n_pad * h1_dim),
    )(adjb, xw1)

    # --- g = h1 @ [W2 || W3]  (small row-tiled GEMM, lane-dense 2*H2 slab) ----
    g = pl.pallas_call(
        _matmul_cast_kernel,
        out_shape=jax.ShapeDtypeStruct((n_pad, 2 * h2_dim), bf16),
        grid=(n_pad // tmg,),
        in_specs=[
            pl.BlockSpec((tmg, h1_dim), lambda i: (i, 0)),
            pl.BlockSpec((h1_dim, 2 * h2_dim), lambda i: (0, 0)),
        ],
        out_specs=pl.BlockSpec((tmg, 2 * h2_dim), lambda i: (i, 0)),
        compiler_params=pltpu.CompilerParams(dimension_semantics=("parallel",)),
        cost_estimate=pl.CostEstimate(
            flops=2 * n_pad * h1_dim * 2 * h2_dim,
            transcendentals=0,
            bytes_accessed=2 * (n_pad * h1_dim + h1_dim * 2 * h2_dim
                                + n_pad * 2 * h2_dim)),
    )(h1, w23b)

    # --- muvar = adj @ g   (f32 output block doubles as the K accumulator) ---
    muvar = pl.pallas_call(
        _gcn_acc_kernel,
        out_shape=jax.ShapeDtypeStruct((n_pad, 2 * h2_dim), jnp.float32),
        grid=grid_mk,
        in_specs=[
            pl.BlockSpec((tm, tk), lambda i, k: (i, k)),             # adj tile
            pl.BlockSpec((tk, 2 * h2_dim), lambda i, k: (k, 0)),     # g K-slice
        ],
        out_specs=pl.BlockSpec((tm, 2 * h2_dim), lambda i, k: (i, 0)),
        compiler_params=pltpu.CompilerParams(
            dimension_semantics=("parallel", "arbitrary")),
        cost_estimate=pl.CostEstimate(
            flops=2 * n_pad * n_pad * 2 * h2_dim,
            transcendentals=0,
            bytes_accessed=(2 * n_pad * n_pad + 2 * n_pad * 2 * h2_dim
                            + 4 * n_pad * 2 * h2_dim)),
    )(adjb, g)

    mu = muvar[:n, :h2_dim]        # f32, matches module output
    logvar = muvar[:n, h2_dim:]    # f32, matches module output

    # --- InnerProductDecoder (act = identity): adj_rec = mu @ mu.T -----------
    # TODO(synk): dropout and reparameterize() noise are training-mode only;
    # in eval mode dropout is identity and z = mu, so both are omitted.
    mu_pad_b = muvar[:, :h2_dim].astype(bf16)   # padded rows are exactly zero
    out_itemsize = jnp.dtype(adj_rec_dtype).itemsize
    adj_rec_full = pl.pallas_call(
        _decoder_kernel,
        out_shape=jax.ShapeDtypeStruct((n_pad, n_pad), adj_rec_dtype),
        grid=(n_pad // dec_tm, n_pad // dec_tn),
        in_specs=[
            pl.BlockSpec((dec_tm, h2_dim), lambda i, j: (i, 0)),
            pl.BlockSpec((dec_tn, h2_dim), lambda i, j: (j, 0)),
        ],
        out_specs=pl.BlockSpec((dec_tm, dec_tn), lambda i, j: (i, j)),
        compiler_params=pltpu.CompilerParams(
            dimension_semantics=("parallel", "parallel")),
        cost_estimate=pl.CostEstimate(
            flops=2 * n_pad * n_pad * h2_dim,
            transcendentals=0,
            bytes_accessed=2 * (2 * n_pad * h2_dim)
                           + out_itemsize * n_pad * n_pad),
    )(mu_pad_b, mu_pad_b)
    adj_rec = adj_rec_full[:n, :n]

    return adj_rec, mu, logvar


# ----------------------------- example / check -------------------------------

def glorot(key, shape):
    limit = jnp.sqrt(6.0 / (shape[0] + shape[1]))
    return jax.random.uniform(key, shape, jnp.float32, -limit, limit)


if __name__ == "__main__":
    # Small, deterministic example shapes.
    N, F_IN, H1, H2 = 64, 32, 32, 16

    key = jax.random.PRNGKey(0)
    kx, ka, k1, k2, k3 = jax.random.split(key, 5)

    # Node features.
    x = jax.random.normal(kx, (N, F_IN), jnp.float32)

    # Random symmetric graph -> symmetrically normalized adjacency with
    # self-loops (standard GCN preprocessing, plain-JAX glue).
    a = (jax.random.uniform(ka, (N, N)) < 0.1).astype(jnp.float32)
    a = jnp.minimum(a + a.T, 1.0)
    a = jnp.minimum(a + jnp.eye(N, dtype=jnp.float32), 1.0)
    deg_inv_sqrt = 1.0 / jnp.sqrt(a.sum(axis=1))
    adj = deg_inv_sqrt[:, None] * a * deg_inv_sqrt[None, :]

    # Deterministic (glorot-uniform) GCN layer weights.
    w1 = glorot(k1, (F_IN, H1))
    w2 = glorot(k2, (H1, H2))
    w3 = glorot(k3, (H1, H2))

    adj_rec, mu, logvar = gcn_encoder_forward(x, adj, w1, w2, w3)
    jax.block_until_ready((adj_rec, mu, logvar))

    assert adj_rec.shape == (N, N)
    assert mu.shape == (N, H2)
    assert logvar.shape == (N, H2)

    # Correctness check against a plain-f32 JAX reference.  Tolerance is
    # relaxed because the kernel runs its matmuls in bf16 (f32 accumulation)
    # and adj_rec is emitted in bf16.
    h1_ref = jnp.maximum(adj @ (x @ w1), 0.0)
    mu_ref = adj @ (h1_ref @ w2)
    logvar_ref = adj @ (h1_ref @ w3)
    adj_rec_ref = mu_ref @ mu_ref.T
    assert jnp.allclose(mu, mu_ref, atol=5e-2, rtol=5e-2)
    assert jnp.allclose(logvar, logvar_ref, atol=5e-2, rtol=5e-2)
    assert jnp.allclose(adj_rec.astype(jnp.float32), adj_rec_ref,
                        atol=5e-2, rtol=5e-2)

    print("KERNEL_OK")
</pallas_src>

<mosaic_0001>
module attributes {stable_mosaic.version = 11 : i64} {
  func.func @_matmul_cast_kernel(%arg0: i32, %arg1: memref<128x32xbf16, #tpu.memory_space<vmem>>, %arg2: memref<32x32xbf16, #tpu.memory_space<vmem>>, %arg3: memref<128x32xbf16, #tpu.memory_space<vmem>>) attributes {dimension_semantics = [#tpu.dimension_semantics<parallel>], iteration_bounds = array<i64: 1>, scalar_prefetch = 0 : i64, scratch_operands = 0 : i64, tpu.core_type = #tpu.core_type<tc>, window_params = [{transform_indices = @transform_0, window_bounds = array<i64: 128, 32>}, {pipeline_mode = #tpu.pipeline_mode<synchronous>, transform_indices = @transform_1, window_bounds = array<i64: 32, 32>}, {transform_indices = @transform_2, window_bounds = array<i64: 128, 32>}]} {
    %c0 = arith.constant 0 : index
    %c0_0 = arith.constant 0 : index
    %0 = vector.load %arg1[%c0, %c0_0] : memref<128x32xbf16, #tpu.memory_space<vmem>>, vector<128x32xbf16>
    %c0_1 = arith.constant 0 : index
    %c0_2 = arith.constant 0 : index
    %1 = vector.load %arg2[%c0_1, %c0_2] : memref<32x32xbf16, #tpu.memory_space<vmem>>, vector<32x32xbf16>
    %cst = arith.constant dense<0.000000e+00> : vector<128x32xf32>
    %2 = tpu.matmul %0, %1, %cst {dimension_numbers = #tpu.dot_dimension_numbers<[1], [0], [0], [1], [0, 0, 1, 1], [], []>} : vector<128x32xbf16>, vector<32x32xbf16>, vector<128x32xf32> -> vector<128x32xf32>
    %3 = arith.truncf %2 : vector<128x32xf32> to vector<128x32xbf16>
    %c0_3 = arith.constant 0 : index
    %c0_4 = arith.constant 0 : index
    %4 = vector.load %arg3[%c0_3, %c0_4] : memref<128x32xbf16, #tpu.memory_space<vmem>>, vector<128x32xbf16>
    tpu.vector_store %arg3[%c0_3, %c0_4], %3 {strides = array<i32>} : memref<128x32xbf16, #tpu.memory_space<vmem>>, vector<128x32xbf16>,
    return
  }
  func.func @transform_0(%arg0: i32) -> (i32, i32) {
    %c0_i32 = arith.constant 0 : i32
    %c0_i32_0 = arith.constant 0 : i32
    return %arg0, %c0_i32 : i32, i32
  }
  func.func @transform_1(%arg0: i32) -> (i32, i32) {
    %c0_i32 = arith.constant 0 : i32
    %c0_i32_0 = arith.constant 0 : i32
    %c0_i32_1 = arith.constant 0 : i32
    return %c0_i32, %c0_i32_0 : i32, i32
  }
  func.func @transform_2(%arg0: i32) -> (i32, i32) {
    %c0_i32 = arith.constant 0 : i32
    %c0_i32_0 = arith.constant 0 : i32
    return %arg0, %c0_i32 : i32, i32
  }
}

</mosaic_0001>

<llo_original>
// kernel: tpu_custom_call.1
$region0: #{tpu_custom_call.1}
  #allocation0 [shape = 'u32[]', space=smem, size = 0x4, offset = 0x4, fixed_abs, tag = 'smem constant byte address 0x4 - core index']
  #allocation1 [shape = 'u32[144,128]{1,0:T(1,128)}', space=vmem, size = 0x12000, scoped, tag = 'internal scratch']
  %s0 = inlined_call_operand.vmem [shape: bf16[128,32], index: 0, kind: input, shape index: {}]
  %s1 = inlined_call_operand.vmem [shape: bf16[32,32], index: 1, kind: input, shape index: {}]
  %s2 = inlined_call_operand.vmem [shape: bf16[128,32], index: 2, kind: output, shape index: {}]
  %s3 = sld [smem:[#allocation0]]
  $region18: #{tpu_custom_call.1} parent=0
    _
  %s5 = ssub.s32 1, %s3
  %s6 = scalar_select 0, %s5, %s3
  // Predicated region
  $region2: #{tpu_custom_call.1} parent=0 // pred_check
    _
  $region3: #{tpu_custom_call.1} parent=0 // pred_check_branch
    %8 = sbr.rel (0) target = $region5
  $region4: #{tpu_custom_call.1} parent=0 // pred_region
    _
  $region5: #{tpu_custom_call.1} parent=0 // pred_fallthru
    _
  // Predicated region
  $region6: #{tpu_custom_call.1} parent=0 // pred_check
    _
  $region7: #{tpu_custom_call.1} parent=0 // pred_check_branch
    %10 = sbr.rel (0) target = $region9
  $region8: #{tpu_custom_call.1} parent=0 // pred_region
    _
  $region9: #{tpu_custom_call.1} parent=0 // pred_fallthru
    _
  %v12 = vld [vmem:[%s0] sm:$0xf]
  %v13 = vld [vmem:[%s0 + $0x4] sm:$0xf]
  %v14 = vld [vmem:[%s0 + $0x8] sm:$0xf]
  %v15 = vld [vmem:[%s0 + $0xc] sm:$0xf]
  %v16 = vld [vmem:[%s0 + $0x10] sm:$0xf]
  %v17 = vld [vmem:[%s0 + $0x14] sm:$0xf]
  %v18 = vld [vmem:[%s0 + $0x18] sm:$0xf]
  %v19 = vld [vmem:[%s0 + $0x1c] sm:$0xf]
  %v20 = vld [vmem:[%s0 + $0x20] sm:$0xf]
  %v21 = vld [vmem:[%s0 + $0x24] sm:$0xf]
  %v22 = vld [vmem:[%s0 + $0x28] sm:$0xf]
  %v23 = vld [vmem:[%s0 + $0x2c] sm:$0xf]
  %v24 = vld [vmem:[%s0 + $0x30] sm:$0xf]
  %v25 = vld [vmem:[%s0 + $0x34] sm:$0xf]
  %v26 = vld [vmem:[%s0 + $0x38] sm:$0xf]
  %v27 = vld [vmem:[%s0 + $0x3c] sm:$0xf]
  %v28 = vld [vmem:[%s1] sm:$0xf]
  %v29 = vld [vmem:[%s1 + $0x4] sm:$0xf]
  %v30 = vld [vmem:[%s1 + $0x8] sm:$0xf]
  %v31 = vld [vmem:[%s1 + $0xc] sm:$0xf]
  %v48 = vunpack.c.l.b16 %v12
  %v49 = vunpack.c.l.b16 %v13
  %v50 = vunpack.c.l.b16 %v14
  %v51 = vunpack.c.l.b16 %v15
  %v52 = vunpack.c.l.b16 %v16
  %v53 = vunpack.c.l.b16 %v17
  %v54 = vunpack.c.l.b16 %v18
  %v55 = vunpack.c.l.b16 %v19
  %v56 = vunpack.c.l.b16 %v20
  %v57 = vunpack.c.l.b16 %v21
  %v58 = vunpack.c.l.b16 %v22
  %v59 = vunpack.c.l.b16 %v23
  %v60 = vunpack.c.l.b16 %v24
  %v61 = vunpack.c.l.b16 %v25
  %v62 = vunpack.c.l.b16 %v26
  %v63 = vunpack.c.l.b16 %v27
  %v64 = vpack.c.b16 %v49, %v48
  %v65 = vpack.c.b16 %v51, %v50
  %v66 = vpack.c.b16 %v53, %v52
  %v67 = vpack.c.b16 %v55, %v54
  %v68 = vpack.c.b16 %v57, %v56
  %v69 = vpack.c.b16 %v59, %v58
  %v70 = vpack.c.b16 %v61, %v60
  %v71 = vpack.c.b16 %v63, %v62
  %v76 = vunpack.c.l.b16 %v28
  %v77 = vunpack.c.l.b16 %v29
  %v78 = vunpack.c.l.b16 %v30
  %v79 = vunpack.c.l.b16 %v31
  %v80 = vpack.c.b16 %v77, %v76
  %v81 = vpack.c.b16 %v79, %v78
  %vm84 = vcmask 261120
  %v86 = vsel %vm84, %v64, 0
  %v89 = vsel %vm84, %v65, 0
  %v92 = vsel %vm84, %v66, 0
  %v95 = vsel %vm84, %v67, 0
  %v98 = vsel %vm84, %v68, 0
  %v101 = vsel %vm84, %v69, 0
  %v104 = vsel %vm84, %v70, 0
  %v107 = vsel %vm84, %v71, 0
  %109 = vmatprep.subr.bf16.mxu0 0
  %110 = vmatpush1.bf16.msra.mxu0 0
  %111 = vmatprep.subr.bf16.mxu0 0
  %112 = vmatpush1.bf16.msra.mxu0 0
  %113 = vmatprep.subr.bf16.mxu0 0
  %114 = vmatpush1.bf16.msra.mxu0 0
  %115 = vmatprep.subr.bf16.mxu0 0
  %116 = vmatpush1.bf16.msra.mxu0 0
  %117 = vmatprep.subr.bf16.mxu0 0
  %118 = vmatpush1.bf16.msra.mxu0 0
  %119 = vmatprep.subr.bf16.mxu0 0
  %120 = vmatpush1.bf16.msra.mxu0 0
  %121 = vmatprep.subr.bf16.mxu0 0
  %122 = vmatpush1.bf16.msra.mxu0 %v81
  %123 = vmatprep.subr.bf16.mxu0 0
  %124 = vmatpush1.bf16.msra.mxu0 %v80
  %125 = vmatprep.subr.bf16.mxu0 0
  %126 = vmatpush2.bf16.msra.mxu0 0
  %127 = vmatprep.subr.bf16.mxu0 0
  %128 = vmatpush2.bf16.msra.mxu0 0
  %129 = vmatprep.subr.bf16.mxu0 0
  %130 = vmatpush2.bf16.msra.mxu0 0
  %131 = vmatprep.subr.bf16.mxu0 0
  %132 = vmatpush2.bf16.msra.mxu0 0
  %133 = vmatprep.subr.bf16.mxu0 0
  %134 = vmatpush2.bf16.msra.mxu0 0
  %135 = vmatprep.subr.bf16.mxu0 0
  %136 = vmatpush2.bf16.msra.mxu0 0
  %137 = vmatprep.subr.bf16.mxu0 0
  %138 = vmatpush2.bf16.msra.mxu0 0
  %139 = vmatprep.subr.bf16.mxu0 0
  %140 = vmatpush2.bf16.msra.mxu0 0
  %141 = vmatprep.mubr.bf16.mxu0 0
  %142 = vmatmul.mubr.bf16.gmra.mxu0 %v86
  %v143 = vpop.f32.mrf.mxu0
  %v144 = vadd.f32 0.0, %v143
  %v145 = vpop.f32.mrf.mxu0
  %v146 = vpop.f32.mrf.mxu0
  %v147 = vadd.f32 0.0, %v146
  %v148 = vpop.f32.mrf.mxu0
  %149 = vmatprep.mubr.bf16.mxu0 0
  %150 = vmatmul.mubr.bf16.gmra.mxu0 %v89
  %v151 = vpop.f32.mrf.mxu0
  %v152 = vadd.f32 0.0, %v151
  %v153 = vpop.f32.mrf.mxu0
  %v154 = vpop.f32.mrf.mxu0
  %v155 = vadd.f32 0.0, %v154
  %v156 = vpop.f32.mrf.mxu0
  %157 = vmatprep.mubr.bf16.mxu0 0
  %158 = vmatmul.mubr.bf16.gmra.mxu0 %v92
  %v159 = vpop.f32.mrf.mxu0
  %v160 = vadd.f32 0.0, %v159
  %v161 = vpop.f32.mrf.mxu0
  %v162 = vpop.f32.mrf.mxu0
  %v163 = vadd.f32 0.0, %v162
  %v164 = vpop.f32.mrf.mxu0
  %165 = vmatprep.mubr.bf16.mxu0 0
  %166 = vmatmul.mubr.bf16.gmra.mxu0 %v95
  %v167 = vpop.f32.mrf.mxu0
  %v168 = vadd.f32 0.0, %v167
  %v169 = vpop.f32.mrf.mxu0
  %v170 = vpop.f32.mrf.mxu0
  %v171 = vadd.f32 0.0, %v170
  %v172 = vpop.f32.mrf.mxu0
  %173 = vmatprep.mubr.bf16.mxu0 0
  %174 = vmatmul.mubr.bf16.gmra.mxu0 %v98
  %v175 = vpop.f32.mrf.mxu0
  %v176 = vadd.f32 0.0, %v175
  %v177 = vpop.f32.mrf.mxu0
  %v178 = vpop.f32.mrf.mxu0
  %v179 = vadd.f32 0.0, %v178
  %v180 = vpop.f32.mrf.mxu0
  %181 = vmatprep.mubr.bf16.mxu0 0
  %182 = vmatmul.mubr.bf16.gmra.mxu0 %v101
  %v183 = vpop.f32.mrf.mxu0
  %v184 = vadd.f32 0.0, %v183
  %v185 = vpop.f32.mrf.mxu0
  %v186 = vpop.f32.mrf.mxu0
  %v187 = vadd.f32 0.0, %v186
  %v188 = vpop.f32.mrf.mxu0
  %189 = vmatprep.mubr.bf16.mxu0 0
  %190 = vmatmul.mubr.bf16.gmra.mxu0 %v104
  %v191 = vpop.f32.mrf.mxu0
  %v192 = vadd.f32 0.0, %v191
  %v193 = vpop.f32.mrf.mxu0
  %v194 = vpop.f32.mrf.mxu0
  %v195 = vadd.f32 0.0, %v194
  %v196 = vpop.f32.mrf.mxu0
  %197 = vmatprep.mubr.bf16.mxu0 0
  %198 = vmatmul.mubr.bf16.gmra.mxu0 %v107
  %v199 = vpop.f32.mrf.mxu0
  %v200 = vadd.f32 0.0, %v199
  %v201 = vpop.f32.mrf.mxu0
  %v202 = vpop.f32.mrf.mxu0
  %v203 = vadd.f32 0.0, %v202
  %v204 = vpop.f32.mrf.mxu0
  %205 = vdwg.mxu0
  %v206 = vpack.c.bf16 %v147, %v144
  %v207 = vpack.c.bf16 %v155, %v152
  %v208 = vpack.c.bf16 %v163, %v160
  %v209 = vpack.c.bf16 %v171, %v168
  %v210 = vpack.c.bf16 %v179, %v176
  %v211 = vpack.c.bf16 %v187, %v184
  %v212 = vpack.c.bf16 %v195, %v192
  %v213 = vpack.c.bf16 %v203, %v200
  %v222 = vunpack.c.l.b16 %v206
  %v223 = vunpack.c.h.b16 %v206
  %v224 = vunpack.c.l.b16 %v207
  %v225 = vunpack.c.h.b16 %v207
  %v226 = vunpack.c.l.b16 %v208
  %v227 = vunpack.c.h.b16 %v208
  %v228 = vunpack.c.l.b16 %v209
  %v229 = vunpack.c.h.b16 %v209
  %v230 = vunpack.c.l.b16 %v210
  %v231 = vunpack.c.h.b16 %v210
  %v232 = vunpack.c.l.b16 %v211
  %v233 = vunpack.c.h.b16 %v211
  %v234 = vunpack.c.l.b16 %v212
  %v235 = vunpack.c.h.b16 %v212
  %v236 = vunpack.c.l.b16 %v213
  %v237 = vunpack.c.h.b16 %v213
  %v238 = vpack.c.b16 %v222, %v222
  %v239 = vpack.c.b16 %v223, %v223
  %v240 = vpack.c.b16 %v224, %v224
  %v241 = vpack.c.b16 %v225, %v225
  %v242 = vpack.c.b16 %v226, %v226
  %v243 = vpack.c.b16 %v227, %v227
  %v244 = vpack.c.b16 %v228, %v228
  %v245 = vpack.c.b16 %v229, %v229
  %v246 = vpack.c.b16 %v230, %v230
  %v247 = vpack.c.b16 %v231, %v231
  %v248 = vpack.c.b16 %v232, %v232
  %v249 = vpack.c.b16 %v233, %v233
  %v250 = vpack.c.b16 %v234, %v234
  %v251 = vpack.c.b16 %v235, %v235
  %v252 = vpack.c.b16 %v236, %v236
  %v253 = vpack.c.b16 %v237, %v237
  %vm270 = vcmask 257024
  %271 = vst.msk [vmem:[%s2] sm:$0xf] %vm270, %v238
  %272 = vst.msk [vmem:[%s2 + $0x4] sm:$0xf] %vm270, %v239
  %273 = vst.msk [vmem:[%s2 + $0x8] sm:$0xf] %vm270, %v240
  %274 = vst.msk [vmem:[%s2 + $0xc] sm:$0xf] %vm270, %v241
  %275 = vst.msk [vmem:[%s2 + $0x10] sm:$0xf] %vm270, %v242
  %276 = vst.msk [vmem:[%s2 + $0x14] sm:$0xf] %vm270, %v243
  %277 = vst.msk [vmem:[%s2 + $0x18] sm:$0xf] %vm270, %v244
  %278 = vst.msk [vmem:[%s2 + $0x1c] sm:$0xf] %vm270, %v245
  %279 = vst.msk [vmem:[%s2 + $0x20] sm:$0xf] %vm270, %v246
  %280 = vst.msk [vmem:[%s2 + $0x24] sm:$0xf] %vm270, %v247
  %281 = vst.msk [vmem:[%s2 + $0x28] sm:$0xf] %vm270, %v248
  %282 = vst.msk [vmem:[%s2 + $0x2c] sm:$0xf] %vm270, %v249
  %283 = vst.msk [vmem:[%s2 + $0x30] sm:$0xf] %vm270, %v250
  %284 = vst.msk [vmem:[%s2 + $0x34] sm:$0xf] %vm270, %v251
  %285 = vst.msk [vmem:[%s2 + $0x38] sm:$0xf] %vm270, %v252
  %286 = vst.msk [vmem:[%s2 + $0x3c] sm:$0xf] %vm270, %v253
  // Predicated region
  $region10: #{tpu_custom_call.1} parent=0 // pred_check
    _
  $region11: #{tpu_custom_call.1} parent=0 // pred_check_branch
    %288 = sbr.rel (0) target = $region13
  $region12: #{tpu_custom_call.1} parent=0 // pred_region
    _
  $region13: #{tpu_custom_call.1} parent=0 // pred_fallthru
    _
  // Predicated region
  $region14: #{tpu_custom_call.1} parent=0 // pred_check
    _
  $region15: #{tpu_custom_call.1} parent=0 // pred_check_branch
    %290 = sbr.rel (0) target = $region17
  $region16: #{tpu_custom_call.1} parent=0 // pred_region
    _
  $region17: #{tpu_custom_call.1} parent=0 // pred_fallthru
    _

</llo_original>
